<compile_context>
chip_gen: v7x
topology: tpu7x:2x2x1
jax: 0.10.0
libtpu: 0.0.40
codegen_flags: <defaults>
</compile_context>

<pallas_src>
import functools
import math

import jax
import jax.numpy as jnp
import numpy as np
from jax.experimental import pallas as pl
from jax.experimental.pallas import tpu as pltpu


# ----------------------------------------------------------------------------
# Host-side one-time table construction (mirrors WhalePositionalEncoding.__init__)
# ----------------------------------------------------------------------------
def build_pe_table(max_len, d_model, dtype=jnp.float32):
    position = jnp.arange(max_len, dtype=jnp.float32)[:, None]               # (L, 1)
    div_term = jnp.exp(jnp.arange(0, d_model, 2, dtype=jnp.float32)
                       * -(math.log(10000.0) / d_model))                     # (D/2,)
    ang = position * div_term                                                # (L, D/2)
    pe = jnp.zeros((max_len, d_model), jnp.float32)
    pe = pe.at[:, 0::2].set(jnp.sin(ang))
    pe = pe.at[:, 1::2].set(jnp.cos(ang))
    return pe.astype(dtype)


# ----------------------------------------------------------------------------
# Pallas kernels
# ----------------------------------------------------------------------------
def _scale_kernel(x_ref, o_ref, *, xscale):
    # Pure VPU elementwise scale on a lane-dense (tile_m, D) slab.
    o_ref[...] = x_ref[...] * jnp.asarray(xscale, x_ref.dtype)


def _copy_kernel(src_ref, dst_ref):
    # Emit the batch-invariant positional window (row-tiled memcpy).
    dst_ref[...] = src_ref[...]


# ----------------------------------------------------------------------------
# Tiling helper: biggest row tile that fits a VMEM budget (multiple of 8,
# or the full extent — satisfies the (8,128) block constraint either way).
# ----------------------------------------------------------------------------
def _pick_row_tile(n_rows, d, itemsize, budget_bytes=4 << 20, max_tile=2048):
    row_bytes = max(1, d * itemsize)
    fit = max(1, budget_bytes // row_bytes)
    if n_rows <= fit and n_rows <= max_tile:
        return n_rows                        # full extent
    tile = min(fit, max_tile, n_rows)
    return max(8, (tile // 8) * 8)           # multiple of 8


_MOSAIC_PARAMS = pltpu.CompilerParams(
    dimension_semantics=("parallel",),
    vmem_limit_bytes=64 << 20,
)


# ----------------------------------------------------------------------------
# Wrapper (the module forward)
# ----------------------------------------------------------------------------
def rel_positional_encoding(x, pe_table, offset=0):
    """Returns (x * sqrt(D), pe[None, offset:offset+T]) — dropout(0.0) is identity."""
    B, T, D = x.shape
    max_len = pe_table.shape[0]
    assert offset + T <= max_len, "offset + time exceeds max_position_embeddings"
    xscale = math.sqrt(D)

    # ---- x * xscale : flatten to (B*T, D), row-tile, batch/time axis parallel ----
    M = B * T
    x2 = x.reshape(M, D)
    tile_m = _pick_row_tile(M, D, x.dtype.itemsize)
    grid_m = pl.cdiv(M, tile_m)

    x_scaled = pl.pallas_call(
        functools.partial(_scale_kernel, xscale=xscale),
        out_shape=jax.ShapeDtypeStruct((M, D), x.dtype),
        grid_spec=pltpu.PrefetchScalarGridSpec(
            num_scalar_prefetch=0,
            grid=(grid_m,),
            in_specs=[pl.BlockSpec((tile_m, D), lambda i: (i, 0))],
            out_specs=pl.BlockSpec((tile_m, D), lambda i: (i, 0)),
        ),
        compiler_params=_MOSAIC_PARAMS,
    )(x2).reshape(B, T, D)

    # ---- pos_emb = pe[offset:offset+T] : batch-invariant, produced once ----
    # `offset` is a static Python int in the module's forward, so this is a
    # static slice (no dynamic gather needed).
    pos_window = jax.lax.slice(pe_table, (offset, 0), (offset + T, D))
    tile_t = _pick_row_tile(T, D, pe_table.dtype.itemsize)
    grid_t = pl.cdiv(T, tile_t)

    pos_emb = pl.pallas_call(
        _copy_kernel,
        out_shape=jax.ShapeDtypeStruct((T, D), pe_table.dtype),
        grid_spec=pltpu.PrefetchScalarGridSpec(
            num_scalar_prefetch=0,
            grid=(grid_t,),
            in_specs=[pl.BlockSpec((tile_t, D), lambda i: (i, 0))],
            out_specs=pl.BlockSpec((tile_t, D), lambda i: (i, 0)),
        ),
        compiler_params=_MOSAIC_PARAMS,
    )(pos_window)[None]                                        # (1, T, D)

    # TODO(synk): dropout (p=config.dropout) is 0.0 by default -> identity; a
    # nonzero rate would need pltpu.prng_seed/prng_random_bits masking here.
    return x_scaled, pos_emb


# ----------------------------------------------------------------------------
# Pure-JAX reference (mirrors RelPositionalEncoding.forward)
# ----------------------------------------------------------------------------
def rel_positional_encoding_reference(x, pe_table, offset=0):
    B, T, D = x.shape
    xscale = math.sqrt(D)
    return x * xscale, pe_table[None, offset:offset + T]


if __name__ == "__main__":
    # Small synthetic config: hidden_size=32, seq=8, batch=2, max_len=128.
    B, T, D = 2, 8, 32
    MAX_LEN = 128
    OFFSET = 0

    key = jax.random.PRNGKey(0)
    x = jax.random.normal(key, (B, T, D), jnp.float32)
    pe_table = build_pe_table(MAX_LEN, D)

    x_out, pos_out = rel_positional_encoding(x, pe_table, OFFSET)
    x_out = jax.block_until_ready(x_out)
    pos_out = jax.block_until_ready(pos_out)

    x_ref, pos_ref = rel_positional_encoding_reference(x, pe_table, OFFSET)
    np.testing.assert_allclose(np.asarray(x_out), np.asarray(x_ref),
                               rtol=1e-6, atol=1e-6)
    np.testing.assert_allclose(np.asarray(pos_out), np.asarray(pos_ref),
                               rtol=1e-6, atol=1e-6)

    print("KERNEL_OK")
</pallas_src>

<mosaic_0001>
module attributes {stable_mosaic.version = 11 : i64} {
  func.func @_scale_kernel(%arg0: i32, %arg1: memref<16x32xf32, #tpu.memory_space<vmem>>, %arg2: memref<16x32xf32, #tpu.memory_space<vmem>>) attributes {dimension_semantics = [#tpu.dimension_semantics<parallel>], iteration_bounds = array<i64: 1>, scalar_prefetch = 0 : i64, scratch_operands = 0 : i64, tpu.core_type = #tpu.core_type<tc>, window_params = [{transform_indices = @transform_0, window_bounds = array<i64: 16, 32>}, {transform_indices = @transform_1, window_bounds = array<i64: 16, 32>}]} {
    %c0 = arith.constant 0 : index
    %c0_0 = arith.constant 0 : index
    %0 = vector.load %arg1[%c0, %c0_0] : memref<16x32xf32, #tpu.memory_space<vmem>>, vector<16x32xf32>
    %cst = arith.constant 5.65685415 : f32
    %1 = vector.broadcast %cst : f32 to vector<16x32xf32>
    %2 = arith.mulf %0, %1 : vector<16x32xf32>
    %c0_1 = arith.constant 0 : index
    %c0_2 = arith.constant 0 : index
    %3 = vector.load %arg2[%c0_1, %c0_2] : memref<16x32xf32, #tpu.memory_space<vmem>>, vector<16x32xf32>
    tpu.vector_store %arg2[%c0_1, %c0_2], %2 {strides = array<i32>} : memref<16x32xf32, #tpu.memory_space<vmem>>, vector<16x32xf32>,
    return
  }
  func.func @transform_0(%arg0: i32) -> (i32, i32) {
    %c0_i32 = arith.constant 0 : i32
    %c0_i32_0 = arith.constant 0 : i32
    return %arg0, %c0_i32 : i32, i32
  }
  func.func @transform_1(%arg0: i32) -> (i32, i32) {
    %c0_i32 = arith.constant 0 : i32
    %c0_i32_0 = arith.constant 0 : i32
    return %arg0, %c0_i32 : i32, i32
  }
}

</mosaic_0001>

<llo_original>
// kernel: tpu_custom_call.1
$region0: #{tpu_custom_call.1}
  #allocation0 [shape = 'u32[]', space=smem, size = 0x4, offset = 0x4, fixed_abs, tag = 'smem constant byte address 0x4 - core index']
  #allocation1 [shape = 'u32[144,128]{1,0:T(1,128)}', space=vmem, size = 0x12000, scoped, tag = 'internal scratch']
  %s0 = inlined_call_operand.hbm [shape: f32[16,32], index: 0, kind: input, shape index: {}]
  %s1 = inlined_call_operand.hbm [shape: f32[16,32], index: 1, kind: output, shape index: {}]
  %s2 = sld [smem:[#allocation0]]
  $region18: #{tpu_custom_call.1} parent=0
    _
  %s4 = ssub.s32 1, %s2
  %s5 = scalar_select 0, %s4, %s2
  $region1: #{tpu_custom_call.1} parent=0
    #allocation2 [shape = 'u8[8192]{0}', space=vmem, size = 0x2000, scoped, tag = 'input window, operand 0, single buffered']
    #allocation3 [shape = 's32[1]{0}', space=sflag, size = 0x4, scoped, tag = 'scoped memory for tpu_custom_call.1']
    #allocation4 [shape = 's32[1]{0}', space=sflag, size = 0x4, scoped, tag = 'scoped memory for tpu_custom_call.1']
    #allocation5 [shape = 'u8[8192]{0}', space=vmem, size = 0x2000, scoped, tag = 'output window, operand 0, single buffered']
    %6 = vsyncpa [#allocation3], 0
    %7 = vsyncpa [#allocation4], 0
    // Predicated region
    $region2: #{tpu_custom_call.1} parent=1 // pred_check
      _
    $region3: #{tpu_custom_call.1} parent=1 // pred_check_branch
      %9 = sbr.rel (0) target = $region5
    $region4: #{tpu_custom_call.1} parent=1 // pred_region
      %s11 = ssub.s32 256, 256
      %12 = vsyncadd [#allocation3], %s11
      %s13 = sshll.u32 [#allocation2], 4
      %s14 = int_to_ptr.vmem [resolvable:$true] %s13
      %19 = dma.hbm_to_vmem [thread:$0]  %s0, 256, %s14, [#allocation3], 128, 128, 8
    $region5: #{tpu_custom_call.1} parent=1 // pred_fallthru
      _
    // Predicated region
    $region6: #{tpu_custom_call.1} parent=1 // pred_check
      _
    $region7: #{tpu_custom_call.1} parent=1 // pred_check_branch
      %21 = sbr.rel (0) target = $region9
    $region8: #{tpu_custom_call.1} parent=1 // pred_region
      %22 = dma.done [#allocation3], 256
    $region9: #{tpu_custom_call.1} parent=1 // pred_fallthru
      _
    %v23 = vld [vmem:[#allocation2] sm:$0xff]
    %v24 = vld [vmem:[#allocation2 + $0x8] sm:$0xff]
    %v25 = vmul.f32 %v23, 5.656854
    %v26 = vmul.f32 %v24, 5.656854
    %vm27 = vcmask 261120
    %28 = vst.msk [vmem:[#allocation5] sm:$0xff] %vm27, %v25
    %29 = vst.msk [vmem:[#allocation5 + $0x8] sm:$0xff] %vm27, %v26
    // Predicated region
    $region10: #{tpu_custom_call.1} parent=1 // pred_check
      _
    $region11: #{tpu_custom_call.1} parent=1 // pred_check_branch
      %31 = sbr.rel (0) target = $region13
    $region12: #{tpu_custom_call.1} parent=1 // pred_region
      %s33 = ssub.s32 256, 256
      %34 = vsyncadd [#allocation4], %s33
      %s35 = sshll.u32 [#allocation5], 4
      %s36 = int_to_ptr.vmem [resolvable:$true] %s35
      %41 = dma.vmem_to_hbm [thread:$0]  %s36, 256, %s1, [#allocation4], 128, 128, 8
    $region13: #{tpu_custom_call.1} parent=1 // pred_fallthru
      _
    // Predicated region
    $region14: #{tpu_custom_call.1} parent=1 // pred_check
      _
    $region15: #{tpu_custom_call.1} parent=1 // pred_check_branch
      %43 = sbr.rel (0) target = $region17
    $region16: #{tpu_custom_call.1} parent=1 // pred_region
      %44 = dma.done [#allocation4], 256
    $region17: #{tpu_custom_call.1} parent=1 // pred_fallthru
      _
    %45 = vsyncpa [#allocation3], 1
    %46 = vsyncpa [#allocation4], 1

</llo_original>
